<compile_context>
chip_gen: v6e
topology: v6e:2x2x1
jax: 0.10.0
libtpu: 0.0.40
codegen_flags: <defaults>
</compile_context>

<pallas_src>
import functools

import jax
import jax.numpy as jnp
from jax import lax
from jax.experimental import pallas as pl
from jax.experimental.pallas import tpu as pltpu

C_IN = 64
C_OUT = 96
K = 3
STRIDE = 2
C_TOTAL = C_IN + C_OUT          # 160
C_TAPS = K * C_IN               # 192


def mixed_3a_kernel(xs_ref, w_ref, out_ref):
    # xs_ref:  (1, 192, TL)  f32   row [k*64 + c] holds x[c, 2*t + k]
    # w_ref:   (96, 192)     bf16  col [k*64 + c] holds w[o, c, k]
    # out_ref: (1, 160, TL)  f32
    xs = xs_ref[0]                                       # (192, TL) f32
    s0 = xs[0 * C_IN:1 * C_IN, :]
    s1 = xs[1 * C_IN:2 * C_IN, :]
    s2 = xs[2 * C_IN:3 * C_IN, :]

    # MaxPool1d(3, stride=2), VALID -- f32, exact PyTorch match.
    pooled = jnp.maximum(jnp.maximum(s0, s1), s2)        # (64, TL)

    # Conv1d(64 -> 96, k=3, stride=2, no bias) as a single fused K=192 bf16
    # matmul on the MXU with f32 accumulation, then ReLU.
    conv = jnp.dot(w_ref[...], xs.astype(jnp.bfloat16),
                   preferred_element_type=jnp.float32)   # (96, TL)
    conv = jnp.maximum(conv, 0.0)

    # Channel-wise concat: pool -> rows [0:64), conv -> rows [64:160).
    # Row splits are sublane-aligned (64 % 8 == 0); stores are full-lane-width.
    out_ref[0, 0:C_IN, :] = pooled.astype(out_ref.dtype)
    out_ref[0, C_IN:C_TOTAL, :] = conv.astype(out_ref.dtype)


@functools.partial(jax.jit, static_argnames=("tl",))
def mixed_3a(x, w, *, tl=2048):
    """x: (N, 64, L) f32, w: (96, 64, 3) f32 -> (N, 160, (L-3)//2 + 1) f32."""
    n, c_in, l = x.shape
    assert c_in == C_IN and w.shape == (C_OUT, C_IN, K)
    assert tl % 128 == 0
    l_out = (l - K) // STRIDE + 1

    # ---- wrapper-side layout plumbing (XLA, outside the kernel) -------------
    # Stride-2 deinterleave: tap k provides x[:, :, 2*t + k] for t in [0, l_out).
    s0 = x[:, :, 0:2 * l_out - 1:2]
    s1 = x[:, :, 1:2 * l_out:2]
    s2 = x[:, :, 2:2 * l_out + 1:2]
    xs = jnp.concatenate([s0, s1, s2], axis=1)           # (N, 192, L_out) f32
    # (96, 64, 3) -> (96, 3, 64) -> (96, 192), bf16 for the MXU.
    w2d = jnp.transpose(w, (0, 2, 1)).reshape(C_OUT, C_TAPS).astype(jnp.bfloat16)

    # Lane-dense length tile: full L_out for short sequences, else TL (mult of 128).
    tl_eff = l_out if l_out <= tl else tl
    num_t = pl.cdiv(l_out, tl_eff)

    flops = 2 * C_OUT * C_TAPS * l_out * n
    bytes_accessed = xs.size * 4 + w2d.size * 2 + n * C_TOTAL * l_out * 4

    return pl.pallas_call(
        mixed_3a_kernel,
        out_shape=jax.ShapeDtypeStruct((n, C_TOTAL, l_out), jnp.float32),
        grid_spec=pltpu.PrefetchScalarGridSpec(
            num_scalar_prefetch=0,
            grid=(n, num_t),
            in_specs=[
                pl.BlockSpec((1, C_TAPS, tl_eff), lambda b, t: (b, 0, t)),
                # Constant index_map: weights DMA'd once, revisited thereafter.
                pl.BlockSpec((C_OUT, C_TAPS), lambda b, t: (0, 0)),
            ],
            out_specs=pl.BlockSpec((1, C_TOTAL, tl_eff), lambda b, t: (b, 0, t)),
        ),
        compiler_params=pltpu.CompilerParams(
            dimension_semantics=("parallel", "parallel"),
            vmem_limit_bytes=32 * 1024 * 1024,
        ),
        cost_estimate=pl.CostEstimate(
            flops=flops, transcendentals=0, bytes_accessed=bytes_accessed),
    )(xs, w2d)


def reference(x, w):
    # Pure-JAX f32 reference mirroring the PyTorch forward.
    pooled = lax.reduce_window(
        x, -jnp.inf, lax.max,
        window_dimensions=(1, 1, K), window_strides=(1, 1, STRIDE),
        padding="VALID")
    conv = lax.conv_general_dilated(
        x, w, window_strides=(STRIDE,), padding="VALID",
        dimension_numbers=("NCH", "OIH", "NCH"))
    conv = jnp.maximum(conv, 0.0)
    return jnp.concatenate([pooled, conv], axis=1)


if __name__ == "__main__":
    key = jax.random.PRNGKey(0)
    kx, kw = jax.random.split(key)

    # Small but shape-consistent with the module: Conv1d expects 64 input channels.
    N, L = 2, 16
    x = jax.random.normal(kx, (N, C_IN, L), dtype=jnp.float32)
    w = jax.random.normal(kw, (C_OUT, C_IN, K), dtype=jnp.float32) * 0.05

    out = mixed_3a(x, w)
    jax.block_until_ready(out)

    ref = reference(x, w)
    l_out = (L - K) // STRIDE + 1
    assert out.shape == (N, C_TOTAL, l_out)
    # MaxPool half: exact f32 path.
    assert jnp.allclose(out[:, :C_IN, :], ref[:, :C_IN, :], atol=1e-5, rtol=1e-5)
    # Conv half: bf16 MXU matmul with f32 accumulate -> looser tolerance.
    assert jnp.allclose(out[:, C_IN:, :], ref[:, C_IN:, :], atol=5e-2, rtol=5e-2)

    print("KERNEL_OK")
</pallas_src>

<mosaic_0001>
module attributes {stable_mosaic.version = 11 : i64} {
  func.func @mixed_3a_kernel(%arg0: i32, %arg1: i32, %arg2: memref<1x192x7xf32, #tpu.memory_space<vmem>>, %arg3: memref<96x192xbf16, #tpu.memory_space<vmem>>, %arg4: memref<1x160x7xf32, #tpu.memory_space<vmem>>) attributes {dimension_semantics = [#tpu.dimension_semantics<parallel>, #tpu.dimension_semantics<parallel>], iteration_bounds = array<i64: 2, 1>, scalar_prefetch = 0 : i64, scratch_operands = 0 : i64, tpu.core_type = #tpu.core_type<tc>, window_params = [{transform_indices = @transform_0, window_bounds = array<i64: 1, 192, 7>}, {pipeline_mode = #tpu.pipeline_mode<synchronous>, transform_indices = @transform_1, window_bounds = array<i64: 96, 192>}, {transform_indices = @transform_2, window_bounds = array<i64: 1, 160, 7>}]} {
    %c0 = arith.constant 0 : index
    %c0_0 = arith.constant 0 : index
    %c0_1 = arith.constant 0 : index
    %0 = vector.load %arg2[%c0, %c0_0, %c0_1] : memref<1x192x7xf32, #tpu.memory_space<vmem>>, vector<1x192x7xf32>
    %1 = vector.shape_cast %0 : vector<1x192x7xf32> to vector<192x7xf32>
    %2 = vector.extract_strided_slice %1 {offsets = [0, 0], sizes = [64, 7], strides = [1, 1]} : vector<192x7xf32> to vector<64x7xf32>
    %3 = vector.extract_strided_slice %1 {offsets = [64, 0], sizes = [64, 7], strides = [1, 1]} : vector<192x7xf32> to vector<64x7xf32>
    %4 = vector.extract_strided_slice %1 {offsets = [128, 0], sizes = [64, 7], strides = [1, 1]} : vector<192x7xf32> to vector<64x7xf32>
    %5 = arith.maximumf %2, %3 : vector<64x7xf32>
    %6 = arith.maximumf %5, %4 : vector<64x7xf32>
    %c0_2 = arith.constant 0 : index
    %c0_3 = arith.constant 0 : index
    %7 = vector.load %arg3[%c0_2, %c0_3] : memref<96x192xbf16, #tpu.memory_space<vmem>>, vector<96x192xbf16>
    %8 = arith.truncf %1 : vector<192x7xf32> to vector<192x7xbf16>
    %cst = arith.constant dense<0.000000e+00> : vector<96x7xf32>
    %9 = tpu.matmul %7, %8, %cst {dimension_numbers = #tpu.dot_dimension_numbers<[1], [0], [0], [1], [0, 0, 1, 1], [], []>} : vector<96x192xbf16>, vector<192x7xbf16>, vector<96x7xf32> -> vector<96x7xf32>
    %cst_4 = arith.constant 0.000000e+00 : f32
    %10 = vector.broadcast %cst_4 : f32 to vector<96x7xf32>
    %11 = arith.maximumf %9, %10 : vector<96x7xf32>
    %c0_5 = arith.constant 0 : index
    %c0_6 = arith.constant 0 : index
    %c0_7 = arith.constant 0 : index
    %12 = vector.load %arg4[%c0_5, %c0_6, %c0_7] : memref<1x160x7xf32, #tpu.memory_space<vmem>>, vector<1x64x7xf32>
    %13 = vector.shape_cast %12 : vector<1x64x7xf32> to vector<64x7xf32>
    %14 = vector.shape_cast %6 : vector<64x7xf32> to vector<1x64x7xf32>
    tpu.vector_store %arg4[%c0_5, %c0_6, %c0_7], %14 {strides = array<i32>} : memref<1x160x7xf32, #tpu.memory_space<vmem>>, vector<1x64x7xf32>,
    %c0_8 = arith.constant 0 : index
    %c64 = arith.constant 64 : index
    %c0_9 = arith.constant 0 : index
    %15 = vector.load %arg4[%c0_8, %c64, %c0_9] : memref<1x160x7xf32, #tpu.memory_space<vmem>>, vector<1x96x7xf32>
    %16 = vector.shape_cast %15 : vector<1x96x7xf32> to vector<96x7xf32>
    %17 = vector.shape_cast %11 : vector<96x7xf32> to vector<1x96x7xf32>
    tpu.vector_store %arg4[%c0_8, %c64, %c0_9], %17 {strides = array<i32>} : memref<1x160x7xf32, #tpu.memory_space<vmem>>, vector<1x96x7xf32>,
    return
  }
  func.func @transform_0(%arg0: i32, %arg1: i32) -> (i32, i32, i32) {
    %c0_i32 = arith.constant 0 : i32
    %c0_i32_0 = arith.constant 0 : i32
    return %arg0, %c0_i32, %arg1 : i32, i32, i32
  }
  func.func @transform_1(%arg0: i32, %arg1: i32) -> (i32, i32) {
    %c0_i32 = arith.constant 0 : i32
    %c0_i32_0 = arith.constant 0 : i32
    %c0_i32_1 = arith.constant 0 : i32
    return %c0_i32, %c0_i32_0 : i32, i32
  }
  func.func @transform_2(%arg0: i32, %arg1: i32) -> (i32, i32, i32) {
    %c0_i32 = arith.constant 0 : i32
    %c0_i32_0 = arith.constant 0 : i32
    return %arg0, %c0_i32, %arg1 : i32, i32, i32
  }
}

</mosaic_0001>

<llo_original>
// kernel: mixed_3a.1
$region0: #{mixed_3a.1}
  #allocation0 [shape = 'u32[]', space=smem, size = 0x4, offset = 0x4, fixed_abs, tag = 'smem constant byte address 0x4 - core index']
  #allocation1 [shape = 'u32[144,128]{1,0:T(1,128)}', space=vmem, size = 0x12000, scoped, tag = 'internal scratch']
  %s0 = inlined_call_operand.vmem [shape: f32[2,192,7], index: 0, kind: input, shape index: {}]
  %s1 = inlined_call_operand.vmem [shape: bf16[96,192], index: 1, kind: input, shape index: {}]
  %s2 = inlined_call_operand.vmem [shape: f32[2,160,7], index: 2, kind: output, shape index: {}]
  %s3 = sld [smem:[#allocation0]]
  $region41: #{mixed_3a.1} parent=0
    _
  %s5 = ssub.s32 1, %s3
  %s6 = scalar_select 0, %s5, %s3
  loop: start=0, step=1, limit=4
  $region2: #{mixed_3a.1} parent=0 // loop_pre_header
    _
  $region3: #{mixed_3a.1} parent=0 // loop_header
    %s8 = sphi 0, %s12
    %p9 = scmp.ge.s32.totalorder %s8, 4
    %s15 = sphi 0, %s27
    %s16 = sphi 0, %s23
    %s17 = sphi 0, %s15
    %s18 = sphi 0, %s16
    %s19 = sphi 0, %s17
    %s20 = sphi 0, %s18
    %s32 = sphi 0, %s34
    %s35 = sphi 0, %s32
    %s36 = sphi 0, %s35
    %s52 = sphi 0, %s36
    %s56 = sphi 0, %s56
    %s58 = sphi 0, %s56
    %s59 = sphi 0, %s58
    %s73 = sphi 0, %s59
    %s81 = sphi 0, %s83
    %s84 = sphi 0, %s81
    %s85 = sphi 0, %s84
    %s101 = sphi 0, %s85
  $region4: #{mixed_3a.1} parent=0 // loop_header_branch
    %11 = sbr.rel (%p9) target = $region8
  $region5: #{mixed_3a.1} parent=0 // loop_body
    %s13 = ssub.s32 %s8, 1
    %s14 = ssub.s32 %s8, 2
    %s21 = sadd.s32 1, %s16
    %p22 = scmp.ge.s32.totalorder %s21, 1
    %s23 = scalar_select %p22, 0, %s21
    %s24 = sadd.s32 1, %s15
    %s25 = scalar_select %p22, %s24, %s15
    %p26 = scmp.ge.s32.totalorder %s25, 2
    %s27 = scalar_select %p26, 0, %s25
    %s28 = ssub.s32 %s15, %s27
    %s29 = ssub.s32 %s16, %s23
    %s30 = sor.u32 %s28, %s29
    %p31 = scmp.eq.s32.totalorder %s30, 0
    %s33 = sadd.s32 %s32, 1
    %s34 = scalar_select %p31, %s32, %s33
    %p37 = pneg %p31
    %p38 = scmp.eq.s32.totalorder %s8, 1
    %p39 = por %p37, %p38
    %p40 = scmp.ne.s32.totalorder %s32, %s35
    %p41 = scmp.eq.s32.totalorder %s8, 0
    %p42 = por %p40, %p41
    %p43 = scmp.ne.s32.totalorder %s32, %s35
    %p44 = scmp.eq.s32.totalorder %s13, 1
    %p45 = por %p43, %p44
    %p46 = scmp.ne.s32.totalorder %s35, %s36
    %p47 = scmp.eq.s32.totalorder %s13, 0
    %p48 = por %p46, %p47
    %p49 = scmp.ne.s32.totalorder %s35, %s36
    %p50 = scmp.eq.s32.totalorder %s14, 1
    %p51 = por %p49, %p50
    %p53 = scmp.ne.s32.totalorder %s36, %s52
    %p54 = scmp.eq.s32.totalorder %s14, 0
    %p55 = por %p53, %p54
    %s57 = sadd.s32 %s56, 1
    %p60 = scmp.eq.s32.totalorder %s8, 1
    %p61 = scmp.ne.s32.totalorder %s56, %s58
    %p62 = scmp.eq.s32.totalorder %s8, 0
    %p63 = por %p61, %p62
    %p64 = scmp.ne.s32.totalorder %s56, %s58
    %p65 = scmp.eq.s32.totalorder %s13, 1
    %p66 = por %p64, %p65
    %p67 = scmp.ne.s32.totalorder %s58, %s59
    %p68 = scmp.eq.s32.totalorder %s13, 0
    %p69 = por %p67, %p68
    %p70 = scmp.ne.s32.totalorder %s58, %s59
    %p71 = scmp.eq.s32.totalorder %s14, 1
    %p72 = por %p70, %p71
    %p74 = scmp.ne.s32.totalorder %s59, %s73
    %p75 = scmp.eq.s32.totalorder %s14, 0
    %p76 = por %p74, %p75
    %s77 = ssub.s32 %s15, %s27
    %s78 = ssub.s32 %s16, %s23
    %s79 = sor.u32 %s77, %s78
    %p80 = scmp.eq.s32.totalorder %s79, 0
    %s82 = sadd.s32 %s81, 1
    %s83 = scalar_select %p80, %s81, %s82
    %p86 = pneg %p80
    %p87 = scmp.eq.s32.totalorder %s8, 1
    %p88 = por %p86, %p87
    %p89 = scmp.ne.s32.totalorder %s81, %s84
    %p90 = scmp.eq.s32.totalorder %s8, 0
    %p91 = por %p89, %p90
    %p92 = scmp.ne.s32.totalorder %s81, %s84
    %p93 = scmp.eq.s32.totalorder %s13, 1
    %p94 = por %p92, %p93
    %p95 = scmp.ne.s32.totalorder %s84, %s85
    %p96 = scmp.eq.s32.totalorder %s13, 0
    %p97 = por %p95, %p96
    %p98 = scmp.ne.s32.totalorder %s84, %s85
    %p99 = scmp.eq.s32.totalorder %s14, 1
    %p100 = por %p98, %p99
    %p102 = scmp.ne.s32.totalorder %s85, %s101
    %p103 = scmp.eq.s32.totalorder %s14, 0
    %p104 = por %p102, %p103
    %p105 = scmp.le.s32.totalorder 1, %s8
    %p106 = scmp.lt.s32.totalorder %s8, 3
    %p107 = pnand %p105, %p106
    %p108 = pneg %p107
    // Predicated region
    $region9: #{mixed_3a.1} parent=5 // pred_check
      _
    $region10: #{mixed_3a.1} parent=5 // pred_check_branch
      %110 = sbr.rel (%p107) target = $region12
    $region11: #{mixed_3a.1} parent=5 // pred_region
      %s111 = ssub.s32 %s8, 1
      // Predicated region
      $region13: #{mixed_3a.1} parent=11 // pred_check
        %p112 = pneg %p69
      $region14: #{mixed_3a.1} parent=11 // pred_check_branch
        %114 = sbr.rel (%p112) target = $region16
      $region15: #{mixed_3a.1} parent=11 // pred_region
        _
      $region16: #{mixed_3a.1} parent=11 // pred_fallthru
        _
    $region12: #{mixed_3a.1} parent=5 // pred_fallthru
      _
    %p115 = scmp.lt.s32.totalorder %s8, 2
    // Predicated region
    $region17: #{mixed_3a.1} parent=5 // pred_check
      %p116 = pneg %p115
    $region18: #{mixed_3a.1} parent=5 // pred_check_branch
      %118 = sbr.rel (%p116) target = $region20
    $region19: #{mixed_3a.1} parent=5 // pred_region
      // Predicated region
      $region21: #{mixed_3a.1} parent=19 // pred_check
        %p119 = pneg %p42
      $region22: #{mixed_3a.1} parent=19 // pred_check_branch
        %121 = sbr.rel (%p119) target = $region24
      $region23: #{mixed_3a.1} parent=19 // pred_region
        %p122 = scmp.lt.s32.totalorder %s15, 1
        %s123 = scalar_select %p122, %s15, 1
        %p124 = scmp.lt.s32.totalorder %s16, 0
        %s125 = scalar_select %p124, %s16, 0
        %s126 = smul.addr %s123, 24
        %s127 = sadd.s32 %s125, %s126
        %s128 = smul.addr %s127, 8
        %s129 = scalar_lea.vmem %s0, %s128
      $region24: #{mixed_3a.1} parent=19 // pred_fallthru
        _
    $region20: #{mixed_3a.1} parent=5 // pred_fallthru
      _
    %p130 = scmp.le.s32.totalorder 1, %s8
    %p131 = scmp.lt.s32.totalorder %s8, 3
    %p132 = pnand %p130, %p131
    %p133 = pneg %p132
    // Predicated region
    $region25: #{mixed_3a.1} parent=5 // pred_check
      _
    $region26: #{mixed_3a.1} parent=5 // pred_check_branch
      %135 = sbr.rel (%p132) target = $region28
    $region27: #{mixed_3a.1} parent=5 // pred_region
      %s136 = ssub.s32 %s8, 1
      %p137 = scmp.lt.s32.totalorder %s17, 1
      %s138 = scalar_select %p137, %s17, 1
      %p139 = scmp.lt.s32.totalorder %s18, 0
      %s140 = scalar_select %p139, %s18, 0
      %s141 = smul.addr %s138, 24
      %s142 = sadd.s32 %s140, %s141
      %s143 = smul.addr %s142, 8
      %s144 = scalar_lea.vmem %s0, %s143
      %p145 = pneg %p48
      %p146 = pneg %p45
      %p147 = pneg %p69
      %p148 = pneg %p66
      %p149 = pneg %p97
      %p150 = pneg %p94
      %p151 = scmp.lt.s32.totalorder %s17, 1
      %s152 = scalar_select %p151, %s17, 1
      %p153 = scmp.lt.s32.totalorder %s18, 0
      %s154 = scalar_select %p153, %s18, 0
      %s155 = smul.addr %s152, 20
      %s156 = sadd.s32 %s154, %s155
      %s157 = smul.addr %s156, 8
      %s158 = scalar_lea.vmem %s2, %s157
      %p159 = scmp.lt.s32.totalorder %s17, 1
      %s160 = scalar_select %p159, %s17, 1
      %p161 = scmp.lt.s32.totalorder %s18, 0
      %s162 = scalar_select %p161, %s18, 0
      %s163 = smul.addr %s160, 24
      %s164 = sadd.s32 %s162, %s163
      %s165 = smul.addr %s164, 8
      %s166 = scalar_lea.vmem %s0, %s165
      %p167 = scmp.lt.s32.totalorder %s17, 1
      %s168 = scalar_select %p167, %s17, 1
      %p169 = scmp.lt.s32.totalorder %s18, 0
      %s170 = scalar_select %p169, %s18, 0
      %s171 = smul.addr %s168, 20
      %s172 = sadd.s32 %s170, %s171
      %s173 = smul.addr %s172, 8
      %s174 = scalar_lea.vmem %s2, %s173
      %v176 = vld [vmem:[%s166] sm:$0xff]
      %v177 = vld [vmem:[%s166 + $0x8] sm:$0xff]
      %v178 = vld [vmem:[%s166 + $0x10] sm:$0xff]
      %v179 = vld [vmem:[%s166 + $0x18] sm:$0xff]
      %v180 = vld [vmem:[%s166 + $0x20] sm:$0xff]
      %v181 = vld [vmem:[%s166 + $0x28] sm:$0xff]
      %v182 = vld [vmem:[%s166 + $0x30] sm:$0xff]
      %v183 = vld [vmem:[%s166 + $0x38] sm:$0xff]
      %v184 = vld [vmem:[%s166 + $0x40] sm:$0xff]
      %v185 = vld [vmem:[%s166 + $0x48] sm:$0xff]
      %v186 = vld [vmem:[%s166 + $0x50] sm:$0xff]
      %v187 = vld [vmem:[%s166 + $0x58] sm:$0xff]
      %v188 = vld [vmem:[%s166 + $0x60] sm:$0xff]
      %v189 = vld [vmem:[%s166 + $0x68] sm:$0xff]
      %v190 = vld [vmem:[%s166 + $0x70] sm:$0xff]
      %v191 = vld [vmem:[%s166 + $0x78] sm:$0xff]
      %v192 = vld [vmem:[%s166 + $0x80] sm:$0xff]
      %v193 = vld [vmem:[%s166 + $0x88] sm:$0xff]
      %v194 = vld [vmem:[%s166 + $0x90] sm:$0xff]
      %v195 = vld [vmem:[%s166 + $0x98] sm:$0xff]
      %v196 = vld [vmem:[%s166 + $0xa0] sm:$0xff]
      %v197 = vld [vmem:[%s166 + $0xa8] sm:$0xff]
      %v198 = vld [vmem:[%s166 + $0xb0] sm:$0xff]
      %v199 = vld [vmem:[%s166 + $0xb8] sm:$0xff]
      %v200 = vmax.f32 %v176, %v184
      %v201 = vmax.f32 %v177, %v185
      %v202 = vmax.f32 %v178, %v186
      %v203 = vmax.f32 %v179, %v187
      %v204 = vmax.f32 %v180, %v188
      %v205 = vmax.f32 %v181, %v189
      %v206 = vmax.f32 %v182, %v190
      %v207 = vmax.f32 %v183, %v191
      %v208 = vmax.f32 %v200, %v192
      %v209 = vmax.f32 %v201, %v193
      %v210 = vmax.f32 %v202, %v194
      %v211 = vmax.f32 %v203, %v195
      %v212 = vmax.f32 %v204, %v196
      %v213 = vmax.f32 %v205, %v197
      %v214 = vmax.f32 %v206, %v198
      %v215 = vmax.f32 %v207, %v199
      %v216 = vld [vmem:[%s1] sm:$0xff]
      %v217 = vld [vmem:[%s1 + $0x8] sm:$0xff]
      %v218 = vld [vmem:[%s1 + $0x10] sm:$0xff]
      %v219 = vld [vmem:[%s1 + $0x18] sm:$0xff]
      %v220 = vld [vmem:[%s1 + $0x20] sm:$0xff]
      %v221 = vld [vmem:[%s1 + $0x28] sm:$0xff]
      %v222 = vld [vmem:[%s1 + $0x30] sm:$0xff]
      %v223 = vld [vmem:[%s1 + $0x38] sm:$0xff]
      %v224 = vld [vmem:[%s1 + $0x40] sm:$0xff]
      %v225 = vld [vmem:[%s1 + $0x48] sm:$0xff]
      %v226 = vld [vmem:[%s1 + $0x50] sm:$0xff]
      %v227 = vld [vmem:[%s1 + $0x58] sm:$0xff]
      %v228 = vpack.c.bf16 %v177, %v176
      %v229 = vpack.c.bf16 %v179, %v178
      %v230 = vpack.c.bf16 %v181, %v180
      %v231 = vpack.c.bf16 %v183, %v182
      %v232 = vpack.c.bf16 %v185, %v184
      %v233 = vpack.c.bf16 %v187, %v186
      %v234 = vpack.c.bf16 %v189, %v188
      %v235 = vpack.c.bf16 %v191, %v190
      %v236 = vpack.c.bf16 %v193, %v192
      %v237 = vpack.c.bf16 %v195, %v194
      %v238 = vpack.c.bf16 %v197, %v196
      %v239 = vpack.c.bf16 %v199, %v198
      %v252 = vunpack.c.l.b16 %v216
      %v253 = vunpack.c.h.b16 %v216
      %v254 = vunpack.c.l.b16 %v217
      %v255 = vunpack.c.h.b16 %v217
      %v256 = vunpack.c.l.b16 %v218
      %v257 = vunpack.c.h.b16 %v218
      %v258 = vunpack.c.l.b16 %v219
      %v259 = vunpack.c.h.b16 %v219
      %v260 = vunpack.c.l.b16 %v220
      %v261 = vunpack.c.h.b16 %v220
      %v262 = vunpack.c.l.b16 %v221
      %v263 = vunpack.c.h.b16 %v221
      %v264 = vunpack.c.l.b16 %v222
      %v265 = vunpack.c.h.b16 %v222
      %v266 = vunpack.c.l.b16 %v223
      %v267 = vunpack.c.h.b16 %v223
      %v268 = vunpack.c.l.b16 %v224
      %v269 = vunpack.c.h.b16 %v224
      %v270 = vunpack.c.l.b16 %v225
      %v271 = vunpack.c.h.b16 %v225
      %v272 = vunpack.c.l.b16 %v226
      %v273 = vunpack.c.h.b16 %v226
      %v274 = vunpack.c.l.b16 %v227
      %v275 = vunpack.c.h.b16 %v227
      %v276 = vpack.c.b16 %v254, %v252
      %v277 = vpack.c.b16 %v255, %v253
      %v278 = vpack.c.b16 %v258, %v256
      %v279 = vpack.c.b16 %v259, %v257
      %v280 = vpack.c.b16 %v262, %v260
      %v281 = vpack.c.b16 %v263, %v261
      %v282 = vpack.c.b16 %v266, %v264
      %v283 = vpack.c.b16 %v267, %v265
      %v284 = vpack.c.b16 %v270, %v268
      %v285 = vpack.c.b16 %v271, %v269
      %v286 = vpack.c.b16 %v274, %v272
      %v287 = vpack.c.b16 %v275, %v273
      %vm294 = vcmask 523264
      %v296 = vsel %vm294, %v277, 0
      %v299 = vsel %vm294, %v279, 0
      %v302 = vsel %vm294, %v281, 0
      %v305 = vsel %vm294, %v283, 0
      %v308 = vsel %vm294, %v285, 0
      %v311 = vsel %vm294, %v287, 0
      %313 = vmatprep.subr.bf16.mxu0 0
      %314 = vmatpush1.bf16.msra.mxu0 %v235
      %315 = vmatprep.subr.bf16.mxu0 0
      %316 = vmatpush1.bf16.msra.mxu0 %v234
      %317 = vmatprep.subr.bf16.mxu0 0
      %318 = vmatpush1.bf16.msra.mxu0 %v233
      %319 = vmatprep.subr.bf16.mxu0 0
      %320 = vmatpush1.bf16.msra.mxu0 %v232
      %321 = vmatprep.subr.bf16.mxu0 0
      %322 = vmatpush1.bf16.msra.mxu0 %v231
      %323 = vmatprep.subr.bf16.mxu0 0
      %324 = vmatpush1.bf16.msra.mxu0 %v230
      %325 = vmatprep.subr.bf16.mxu0 0
      %326 = vmatpush1.bf16.msra.mxu0 %v229
      %327 = vmatprep.subr.bf16.mxu0 0
      %328 = vmatpush1.bf16.msra.mxu0 %v228
      %329 = vmatprep.subr.bf16.mxu0 0
      %330 = vmatpush2.bf16.msra.mxu0 0
      %331 = vmatprep.subr.bf16.mxu0 0
      %332 = vmatpush2.bf16.msra.mxu0 0
      %333 = vmatprep.subr.bf16.mxu0 0
      %334 = vmatpush2.bf16.msra.mxu0 0
      %335 = vmatprep.subr.bf16.mxu0 0
      %336 = vmatpush2.bf16.msra.mxu0 0
      %337 = vmatprep.subr.bf16.mxu0 0
      %338 = vmatpush2.bf16.msra.mxu0 %v239
      %339 = vmatprep.subr.bf16.mxu0 0
      %340 = vmatpush2.bf16.msra.mxu0 %v238
      %341 = vmatprep.subr.bf16.mxu0 0
      %342 = vmatpush2.bf16.msra.mxu0 %v237
      %343 = vmatprep.subr.bf16.mxu0 0
      %344 = vmatpush2.bf16.msra.mxu0 %v236
      %345 = vmatprep.mubr.bf16.mxu0 %v296
      %346 = vmatmul.mubr.bf16.gmra.mxu0 %v276
      %v347 = vpop.f32.mrf.mxu0
      %v348 = vadd.f32 0.0, %v347
      %v349 = vpop.f32.mrf.mxu0
      %v350 = vpop.f32.mrf.mxu0
      %v351 = vadd.f32 0.0, %v350
      %v352 = vpop.f32.mrf.mxu0
      %353 = vmatprep.mubr.bf16.mxu0 %v299
      %354 = vmatmul.mubr.bf16.gmra.mxu0 %v278
      %v355 = vpop.f32.mrf.mxu0
      %v356 = vadd.f32 0.0, %v355
      %v357 = vpop.f32.mrf.mxu0
      %v358 = vpop.f32.mrf.mxu0
      %v359 = vadd.f32 0.0, %v358
      %v360 = vpop.f32.mrf.mxu0
      %361 = vmatprep.mubr.bf16.mxu0 %v302
      %362 = vmatmul.mubr.bf16.gmra.mxu0 %v280
      %v363 = vpop.f32.mrf.mxu0
      %v364 = vadd.f32 0.0, %v363
      %v365 = vpop.f32.mrf.mxu0
      %v366 = vpop.f32.mrf.mxu0
      %v367 = vadd.f32 0.0, %v366
      %v368 = vpop.f32.mrf.mxu0
      %369 = vmatprep.mubr.bf16.mxu0 %v305
      %370 = vmatmul.mubr.bf16.gmra.mxu0 %v282
      %v371 = vpop.f32.mrf.mxu0
      %v372 = vadd.f32 0.0, %v371
      %v373 = vpop.f32.mrf.mxu0
      %v374 = vpop.f32.mrf.mxu0
      %v375 = vadd.f32 0.0, %v374
      %v376 = vpop.f32.mrf.mxu0
      %377 = vmatprep.mubr.bf16.mxu0 %v308
      %378 = vmatmul.mubr.bf16.gmra.mxu0 %v284
      %v379 = vpop.f32.mrf.mxu0
      %v380 = vadd.f32 0.0, %v379
      %v381 = vpop.f32.mrf.mxu0
      %v382 = vpop.f32.mrf.mxu0
      %v383 = vadd.f32 0.0, %v382
      %v384 = vpop.f32.mrf.mxu0
      %385 = vmatprep.mubr.bf16.mxu0 %v311
      %386 = vmatmul.mubr.bf16.gmra.mxu0 %v286
      %v387 = vpop.f32.mrf.mxu0
      %v388 = vadd.f32 0.0, %v387
      %v389 = vpop.f32.mrf.mxu0
      %v390 = vpop.f32.mrf.mxu0
      %v391 = vadd.f32 0.0, %v390
      %v392 = vpop.f32.mrf.mxu0
      %393 = vdwg.mxu0
      %v394 = vmax.f32 %v348, 0.0
      %v395 = vmax.f32 %v351, 0.0
      %v396 = vmax.f32 %v356, 0.0
      %v397 = vmax.f32 %v359, 0.0
      %v398 = vmax.f32 %v364, 0.0
      %v399 = vmax.f32 %v367, 0.0
      %v400 = vmax.f32 %v372, 0.0
      %v401 = vmax.f32 %v375, 0.0
      %v402 = vmax.f32 %v380, 0.0
      %v403 = vmax.f32 %v383, 0.0
      %v404 = vmax.f32 %v388, 0.0
      %v405 = vmax.f32 %v391, 0.0
      %vm406 = vcmask 56320
      %407 = vst.msk [vmem:[%s174] sm:$0xff] %vm406, %v208
      %408 = vst.msk [vmem:[%s174 + $0x8] sm:$0xff] %vm406, %v209
      %409 = vst.msk [vmem:[%s174 + $0x10] sm:$0xff] %vm406, %v210
      %410 = vst.msk [vmem:[%s174 + $0x18] sm:$0xff] %vm406, %v211
      %411 = vst.msk [vmem:[%s174 + $0x20] sm:$0xff] %vm406, %v212
      %412 = vst.msk [vmem:[%s174 + $0x28] sm:$0xff] %vm406, %v213
      %413 = vst.msk [vmem:[%s174 + $0x30] sm:$0xff] %vm406, %v214
      %414 = vst.msk [vmem:[%s174 + $0x38] sm:$0xff] %vm406, %v215
      %415 = vst.msk [vmem:[%s174 + $0x40] sm:$0xff] %vm406, %v394
      %416 = vst.msk [vmem:[%s174 + $0x48] sm:$0xff] %vm406, %v395
      %417 = vst.msk [vmem:[%s174 + $0x50] sm:$0xff] %vm406, %v396
      %418 = vst.msk [vmem:[%s174 + $0x58] sm:$0xff] %vm406, %v397
      %419 = vst.msk [vmem:[%s174 + $0x60] sm:$0xff] %vm406, %v398
      %420 = vst.msk [vmem:[%s174 + $0x68] sm:$0xff] %vm406, %v399
      %421 = vst.msk [vmem:[%s174 + $0x70] sm:$0xff] %vm406, %v400
      %422 = vst.msk [vmem:[%s174 + $0x78] sm:$0xff] %vm406, %v401
      %423 = vst.msk [vmem:[%s174 + $0x80] sm:$0xff] %vm406, %v402
      %424 = vst.msk [vmem:[%s174 + $0x88] sm:$0xff] %vm406, %v403
      %425 = vst.msk [vmem:[%s174 + $0x90] sm:$0xff] %vm406, %v404
      %426 = vst.msk [vmem:[%s174 + $0x98] sm:$0xff] %vm406, %v405
      %p427 = scmp.lt.s32.totalorder %s17, 1
      %s428 = scalar_select %p427, %s17, 1
      %p429 = scmp.lt.s32.totalorder %s18, 0
      %s430 = scalar_select %p429, %s18, 0
      %s431 = smul.addr %s428, 20
      %s432 = sadd.s32 %s430, %s431
      %s433 = smul.addr %s432, 8
      %s434 = scalar_lea.vmem %s2, %s433
      // Predicated region
      $region29: #{mixed_3a.1} parent=27 // pred_check
        %p435 = pneg %p94
      $region30: #{mixed_3a.1} parent=27 // pred_check_branch
        %437 = sbr.rel (%p435) target = $region32
      $region31: #{mixed_3a.1} parent=27 // pred_region
        _
      $region32: #{mixed_3a.1} parent=27 // pred_fallthru
        _
    $region28: #{mixed_3a.1} parent=5 // pred_fallthru
      _
    %p438 = scmp.le.s32.totalorder 2, %s8
    // Predicated region
    $region33: #{mixed_3a.1} parent=5 // pred_check
      %p439 = pneg %p438
    $region34: #{mixed_3a.1} parent=5 // pred_check_branch
      %441 = sbr.rel (%p439) target = $region36
    $region35: #{mixed_3a.1} parent=5 // pred_region
      %s442 = ssub.s32 %s8, 2
      // Predicated region
      $region37: #{mixed_3a.1} parent=35 // pred_check
        %p443 = pneg %p100
      $region38: #{mixed_3a.1} parent=35 // pred_check_branch
        %445 = sbr.rel (%p443) target = $region40
      $region39: #{mixed_3a.1} parent=35 // pred_region
        %p446 = scmp.lt.s32.totalorder %s19, 1
        %s447 = scalar_select %p446, %s19, 1
        %p448 = scmp.lt.s32.totalorder %s20, 0
        %s449 = scalar_select %p448, %s20, 0
        %s450 = smul.addr %s447, 20
        %s451 = sadd.s32 %s449, %s450
        %s452 = smul.addr %s451, 8
        %s453 = scalar_lea.vmem %s2, %s452
      $region40: #{mixed_3a.1} parent=35 // pred_fallthru
        _
    $region36: #{mixed_3a.1} parent=5 // pred_fallthru
      _
  $region6: #{mixed_3a.1} parent=0 // loop_footer
    %s12 = sadd.s32 1, %s8
  $region7: #{mixed_3a.1} parent=0 // loop_footer_branch
    %7 = sbr.rel target = $region3
  $region8: #{mixed_3a.1} parent=0 // loop_exit
    _

</llo_original>
